<compile_context>
chip_gen: v5e
topology: v5e:2x2
jax: 0.10.0
libtpu: 0.0.40
codegen_flags: <defaults>
</compile_context>

<pallas_src>
import functools

import jax
import jax.numpy as jnp
from jax.experimental import pallas as pl
from jax.experimental.pallas import tpu as pltpu

HIDDEN = 256
HEAD_LANES = 128   # fused actor+critic output lanes (requires action_dim + 1 <= 128)


def _policy_kernel(x_ref, w1_ref, b1_ref, w2_ref, b2_ref, wh_ref, bh_ref,
                   act_ref, val_ref):
    """3 MXU matmuls (bf16 x bf16 -> f32 accumulate) + VPU bias/relu on one
    batch tile. Actor+critic heads are fused into one 128-lane matmul; the
    result is sliced in-register into the two narrow output streams."""
    a = act_ref.shape[-1]                                   # action_dim (static)

    x = x_ref[...].astype(jnp.bfloat16)                     # f32 tile -> bf16 (free VPU cast)

    h1 = jnp.dot(x, w1_ref[...], preferred_element_type=jnp.float32)
    h1 = jnp.maximum(h1 + b1_ref[...], 0.0).astype(jnp.bfloat16)

    h2 = jnp.dot(h1, w2_ref[...], preferred_element_type=jnp.float32)
    h2 = jnp.maximum(h2 + b2_ref[...], 0.0).astype(jnp.bfloat16)

    head = jnp.dot(h2, wh_ref[...], preferred_element_type=jnp.float32) + bh_ref[...]

    act_ref[...] = head[:, :a]                               # actor lanes
    val_ref[...] = head[:, a:a + 1]                          # critic lane


def _round_up(x, m):
    return ((x + m - 1) // m) * m


def prepare_params(params, action_dim):
    """One-time packing of f32 (in_features, out_features) params:
    bf16 weights + fused actor/critic head. Call once, outside the hot path."""
    w1, b1, w2, b2, wa, ba, wc, bc = (
        params["w1"], params["b1"], params["w2"], params["b2"],
        params["wa"], params["ba"], params["wc"], params["bc"],
    )
    H = w1.shape[1]
    A = wa.shape[1]
    assert A == action_dim and A + 1 <= HEAD_LANES
    # TODO(synk): if action_dim + 1 > 128 the fused head needs its own lane tiling.

    # Fused head: lanes [0:A] = actor weights/bias, lane A = critic, rest zero.
    wh = jnp.zeros((H, HEAD_LANES), jnp.float32)
    wh = wh.at[:, :A].set(wa).at[:, A].set(wc[:, 0])
    bh = jnp.zeros((1, HEAD_LANES), jnp.float32)
    bh = bh.at[0, :A].set(ba).at[0, A].set(bc[0])

    return dict(
        w1=w1.astype(jnp.bfloat16),
        b1=b1.reshape(1, H).astype(jnp.float32),
        w2=w2.astype(jnp.bfloat16),
        b2=b2.reshape(1, H).astype(jnp.float32),
        wh=wh.astype(jnp.bfloat16),
        bh=bh,
    )


@functools.partial(jax.jit, static_argnames=("action_dim", "block_b"))
def continuous_policy_forward(x, prepped, *, action_dim, block_b=1024):
    """x: (B, state_dim) float32.
    Returns (action_means (B, action_dim), state_value (B, 1)), both float32."""
    B, S = x.shape
    H = prepped["w1"].shape[1]
    assert block_b % 16 == 0

    # Batch tile: at least one 16-row tile (bf16 packs 16 sublanes/vreg),
    # at most block_b rows.
    tb = min(block_b, _round_up(B, 16))
    # v7x megacore: for large batches keep >= 2 grid steps so the "parallel"
    # batch axis can shard across both TensorCores.
    if B > 1024:
        tb = min(tb, _round_up(pl.cdiv(B, 2), 16))
    grid = (pl.cdiv(B, tb),)      # ragged last block handled by Pallas masking

    resident = lambda shape: pl.BlockSpec(shape, lambda i: (0, 0))

    action_means, state_value = pl.pallas_call(
        _policy_kernel,
        out_shape=(
            jax.ShapeDtypeStruct((B, action_dim), jnp.float32),
            jax.ShapeDtypeStruct((B, 1), jnp.float32),
        ),
        grid_spec=pltpu.PrefetchScalarGridSpec(
            num_scalar_prefetch=0,
            grid=grid,
            in_specs=[
                pl.BlockSpec((tb, S), lambda i: (i, 0)),   # x (f32): streamed per batch tile
                resident((S, H)),                          # w1 (bf16, resident)
                resident((1, H)),                          # b1 (f32)
                resident((H, H)),                          # w2 (bf16, resident)
                resident((1, H)),                          # b2 (f32)
                resident((H, HEAD_LANES)),                 # fused actor+critic W (bf16)
                resident((1, HEAD_LANES)),                 # fused actor+critic bias (f32)
            ],
            out_specs=[
                pl.BlockSpec((tb, action_dim), lambda i: (i, 0)),   # action_means
                pl.BlockSpec((tb, 1), lambda i: (i, 0)),            # state_value
            ],
        ),
        compiler_params=pltpu.CompilerParams(
            dimension_semantics=("parallel",),        # batch axis shards across TCs
            vmem_limit_bytes=32 * 1024 * 1024,        # lift v5e's 16 MiB scoped default
        ),
    )(x, prepped["w1"], prepped["b1"], prepped["w2"], prepped["b2"],
      prepped["wh"], prepped["bh"])

    return action_means, state_value


def init_params(key, state_dim, action_dim, hidden=HIDDEN):
    """Deterministic init mimicking torch.nn.Linear default (U[-1/sqrt(fan_in), +])."""
    ks = jax.random.split(key, 8)

    def lin(kw, kb, fan_in, fan_out):
        bound = 1.0 / jnp.sqrt(jnp.float32(fan_in))
        w = jax.random.uniform(kw, (fan_in, fan_out), jnp.float32, -bound, bound)
        b = jax.random.uniform(kb, (fan_out,), jnp.float32, -bound, bound)
        return w, b

    w1, b1 = lin(ks[0], ks[1], state_dim, hidden)
    w2, b2 = lin(ks[2], ks[3], hidden, hidden)
    wa, ba = lin(ks[4], ks[5], hidden, action_dim)
    wc, bc = lin(ks[6], ks[7], hidden, 1)
    return dict(w1=w1, b1=b1, w2=w2, b2=b2, wa=wa, ba=ba, wc=wc, bc=bc)


def reference_forward(x, p):
    h1 = jnp.maximum(x @ p["w1"] + p["b1"], 0.0)
    h2 = jnp.maximum(h1 @ p["w2"] + p["b2"], 0.0)
    return h2 @ p["wa"] + p["ba"], h2 @ p["wc"] + p["bc"]


def _check(x, params, prepped, action_dim, **kw):
    a, v = continuous_policy_forward(x, prepped, action_dim=action_dim, **kw)
    jax.block_until_ready((a, v))
    ra, rv = reference_forward(x, params)
    assert a.shape == (x.shape[0], action_dim) and v.shape == (x.shape[0], 1)
    # bf16 weights/activations at the MXU -> loosened tolerance vs. the f32 reference.
    assert jnp.allclose(a, ra, atol=3e-2, rtol=3e-2), float(jnp.max(jnp.abs(a - ra)))
    assert jnp.allclose(v, rv, atol=3e-2, rtol=3e-2), float(jnp.max(jnp.abs(v - rv)))


if __name__ == "__main__":
    key = jax.random.PRNGKey(0)
    k_x, k_x2, k_p = jax.random.split(key, 3)

    batch = 2
    state_dim = 16      # env._get_state() length (synthetic small choice)
    action_dim = 4

    params = init_params(k_p, state_dim, action_dim)
    prepped = prepare_params(params, action_dim)   # one-time weight packing

    # Small batch (single ragged block).
    x = jax.random.normal(k_x, (batch, state_dim), jnp.float32)
    _check(x, params, prepped, action_dim)

    # Multi-step grid with a ragged last block (exercises edge masking).
    x2 = jax.random.normal(k_x2, (50, state_dim), jnp.float32)
    _check(x2, params, prepped, action_dim, block_b=16)

    print("KERNEL_OK")
</pallas_src>

<mosaic_0001>
module attributes {stable_mosaic.version = 11 : i64} {
  func.func @_policy_kernel(%arg0: i32, %arg1: memref<16x16xf32, #tpu.memory_space<vmem>>, %arg2: memref<16x256xbf16, #tpu.memory_space<vmem>>, %arg3: memref<1x256xf32, #tpu.memory_space<vmem>>, %arg4: memref<256x256xbf16, #tpu.memory_space<vmem>>, %arg5: memref<1x256xf32, #tpu.memory_space<vmem>>, %arg6: memref<256x128xbf16, #tpu.memory_space<vmem>>, %arg7: memref<1x128xf32, #tpu.memory_space<vmem>>, %arg8: memref<16x4xf32, #tpu.memory_space<vmem>>, %arg9: memref<16x1xf32, #tpu.memory_space<vmem>>) attributes {dimension_semantics = [#tpu.dimension_semantics<parallel>], iteration_bounds = array<i64: 1>, scalar_prefetch = 0 : i64, scratch_operands = 0 : i64, tpu.core_type = #tpu.core_type<tc>, window_params = [{transform_indices = @transform_0, window_bounds = array<i64: 16, 16>}, {pipeline_mode = #tpu.pipeline_mode<synchronous>, transform_indices = @transform_1, window_bounds = array<i64: 16, 256>}, {pipeline_mode = #tpu.pipeline_mode<synchronous>, transform_indices = @transform_2, window_bounds = array<i64: 1, 256>}, {pipeline_mode = #tpu.pipeline_mode<synchronous>, transform_indices = @transform_3, window_bounds = array<i64: 256, 256>}, {pipeline_mode = #tpu.pipeline_mode<synchronous>, transform_indices = @transform_4, window_bounds = array<i64: 1, 256>}, {pipeline_mode = #tpu.pipeline_mode<synchronous>, transform_indices = @transform_5, window_bounds = array<i64: 256, 128>}, {pipeline_mode = #tpu.pipeline_mode<synchronous>, transform_indices = @transform_6, window_bounds = array<i64: 1, 128>}, {transform_indices = @transform_7, window_bounds = array<i64: 16, 4>}, {transform_indices = @transform_8, window_bounds = array<i64: 16, 1>}]} {
    %c0 = arith.constant 0 : index
    %c0_0 = arith.constant 0 : index
    %0 = vector.load %arg1[%c0, %c0_0] : memref<16x16xf32, #tpu.memory_space<vmem>>, vector<16x16xf32>
    %1 = arith.truncf %0 : vector<16x16xf32> to vector<16x16xbf16>
    %c0_1 = arith.constant 0 : index
    %c0_2 = arith.constant 0 : index
    %2 = vector.load %arg2[%c0_1, %c0_2] : memref<16x256xbf16, #tpu.memory_space<vmem>>, vector<16x256xbf16>
    %cst = arith.constant dense<0.000000e+00> : vector<16x256xf32>
    %3 = tpu.matmul %1, %2, %cst {dimension_numbers = #tpu.dot_dimension_numbers<[1], [0], [0], [1], [0, 0, 1, 1], [], []>} : vector<16x16xbf16>, vector<16x256xbf16>, vector<16x256xf32> -> vector<16x256xf32>
    %c0_3 = arith.constant 0 : index
    %c0_4 = arith.constant 0 : index
    %4 = vector.load %arg3[%c0_3, %c0_4] : memref<1x256xf32, #tpu.memory_space<vmem>>, vector<1x256xf32>
    %5 = vector.broadcast %4 : vector<1x256xf32> to vector<16x256xf32>
    %6 = arith.addf %3, %5 : vector<16x256xf32>
    %cst_5 = arith.constant 0.000000e+00 : f32
    %7 = vector.broadcast %cst_5 : f32 to vector<16x256xf32>
    %8 = arith.maximumf %6, %7 : vector<16x256xf32>
    %9 = arith.truncf %8 : vector<16x256xf32> to vector<16x256xbf16>
    %c0_6 = arith.constant 0 : index
    %c0_7 = arith.constant 0 : index
    %10 = vector.load %arg4[%c0_6, %c0_7] : memref<256x256xbf16, #tpu.memory_space<vmem>>, vector<256x256xbf16>
    %cst_8 = arith.constant dense<0.000000e+00> : vector<16x256xf32>
    %11 = tpu.matmul %9, %10, %cst_8 {dimension_numbers = #tpu.dot_dimension_numbers<[1], [0], [0], [1], [0, 0, 1, 1], [], []>} : vector<16x256xbf16>, vector<256x256xbf16>, vector<16x256xf32> -> vector<16x256xf32>
    %c0_9 = arith.constant 0 : index
    %c0_10 = arith.constant 0 : index
    %12 = vector.load %arg5[%c0_9, %c0_10] : memref<1x256xf32, #tpu.memory_space<vmem>>, vector<1x256xf32>
    %13 = vector.broadcast %12 : vector<1x256xf32> to vector<16x256xf32>
    %14 = arith.addf %11, %13 : vector<16x256xf32>
    %cst_11 = arith.constant 0.000000e+00 : f32
    %15 = vector.broadcast %cst_11 : f32 to vector<16x256xf32>
    %16 = arith.maximumf %14, %15 : vector<16x256xf32>
    %17 = arith.truncf %16 : vector<16x256xf32> to vector<16x256xbf16>
    %c0_12 = arith.constant 0 : index
    %c0_13 = arith.constant 0 : index
    %18 = vector.load %arg6[%c0_12, %c0_13] : memref<256x128xbf16, #tpu.memory_space<vmem>>, vector<256x128xbf16>
    %cst_14 = arith.constant dense<0.000000e+00> : vector<16x128xf32>
    %19 = tpu.matmul %17, %18, %cst_14 {dimension_numbers = #tpu.dot_dimension_numbers<[1], [0], [0], [1], [0, 0, 1, 1], [], []>} : vector<16x256xbf16>, vector<256x128xbf16>, vector<16x128xf32> -> vector<16x128xf32>
    %c0_15 = arith.constant 0 : index
    %c0_16 = arith.constant 0 : index
    %20 = vector.load %arg7[%c0_15, %c0_16] : memref<1x128xf32, #tpu.memory_space<vmem>>, vector<1x128xf32>
    %21 = vector.broadcast %20 : vector<1x128xf32> to vector<16x128xf32>
    %22 = arith.addf %19, %21 : vector<16x128xf32>
    %23 = vector.extract_strided_slice %22 {offsets = [0, 0], sizes = [16, 4], strides = [1, 1]} : vector<16x128xf32> to vector<16x4xf32>
    %c0_17 = arith.constant 0 : index
    %c0_18 = arith.constant 0 : index
    %24 = vector.load %arg8[%c0_17, %c0_18] : memref<16x4xf32, #tpu.memory_space<vmem>>, vector<16x4xf32>
    tpu.vector_store %arg8[%c0_17, %c0_18], %23 {strides = array<i32>} : memref<16x4xf32, #tpu.memory_space<vmem>>, vector<16x4xf32>,
    %25 = vector.extract_strided_slice %22 {offsets = [0, 4], sizes = [16, 1], strides = [1, 1]} : vector<16x128xf32> to vector<16x1xf32>
    %c0_19 = arith.constant 0 : index
    %c0_20 = arith.constant 0 : index
    %26 = vector.load %arg9[%c0_19, %c0_20] : memref<16x1xf32, #tpu.memory_space<vmem>>, vector<16x1xf32>
    tpu.vector_store %arg9[%c0_19, %c0_20], %25 {strides = array<i32>} : memref<16x1xf32, #tpu.memory_space<vmem>>, vector<16x1xf32>,
    return
  }
  func.func @transform_0(%arg0: i32) -> (i32, i32) {
    %c0_i32 = arith.constant 0 : i32
    %c0_i32_0 = arith.constant 0 : i32
    return %arg0, %c0_i32 : i32, i32
  }
  func.func @transform_1(%arg0: i32) -> (i32, i32) {
    %c0_i32 = arith.constant 0 : i32
    %c0_i32_0 = arith.constant 0 : i32
    %c0_i32_1 = arith.constant 0 : i32
    return %c0_i32, %c0_i32_0 : i32, i32
  }
  func.func @transform_2(%arg0: i32) -> (i32, i32) {
    %c0_i32 = arith.constant 0 : i32
    %c0_i32_0 = arith.constant 0 : i32
    %c0_i32_1 = arith.constant 0 : i32
    return %c0_i32, %c0_i32_0 : i32, i32
  }
  func.func @transform_3(%arg0: i32) -> (i32, i32) {
    %c0_i32 = arith.constant 0 : i32
    %c0_i32_0 = arith.constant 0 : i32
    %c0_i32_1 = arith.constant 0 : i32
    return %c0_i32, %c0_i32_0 : i32, i32
  }
  func.func @transform_4(%arg0: i32) -> (i32, i32) {
    %c0_i32 = arith.constant 0 : i32
    %c0_i32_0 = arith.constant 0 : i32
    %c0_i32_1 = arith.constant 0 : i32
    return %c0_i32, %c0_i32_0 : i32, i32
  }
  func.func @transform_5(%arg0: i32) -> (i32, i32) {
    %c0_i32 = arith.constant 0 : i32
    %c0_i32_0 = arith.constant 0 : i32
    %c0_i32_1 = arith.constant 0 : i32
    return %c0_i32, %c0_i32_0 : i32, i32
  }
  func.func @transform_6(%arg0: i32) -> (i32, i32) {
    %c0_i32 = arith.constant 0 : i32
    %c0_i32_0 = arith.constant 0 : i32
    %c0_i32_1 = arith.constant 0 : i32
    return %c0_i32, %c0_i32_0 : i32, i32
  }
  func.func @transform_7(%arg0: i32) -> (i32, i32) {
    %c0_i32 = arith.constant 0 : i32
    %c0_i32_0 = arith.constant 0 : i32
    return %arg0, %c0_i32 : i32, i32
  }
  func.func @transform_8(%arg0: i32) -> (i32, i32) {
    %c0_i32 = arith.constant 0 : i32
    %c0_i32_0 = arith.constant 0 : i32
    return %arg0, %c0_i32 : i32, i32
  }
}

</mosaic_0001>

<llo_original>
// kernel: continuous_policy_forward.1
$region0: #{continuous_policy_forward.1}
  #allocation0 [shape = 'u32[]', space=smem, size = 0x4, offset = 0x4, fixed_abs, tag = 'smem constant byte address 0x4 - core index']
  #allocation1 [shape = 'u32[72,128]{1,0:T(1,128)}', space=vmem, size = 0x9000, scoped, tag = 'internal scratch']
  %s0 = inlined_call_operand.hbm [shape: f32[2,16], index: 0, kind: input, shape index: {}]
  %s1 = inlined_call_operand.hbm [shape: bf16[16,256], index: 1, kind: input, shape index: {}]
  %s2 = inlined_call_operand.hbm [shape: f32[1,256], index: 2, kind: input, shape index: {}]
  %s3 = inlined_call_operand.hbm [shape: bf16[256,256], index: 3, kind: input, shape index: {}]
  %s4 = inlined_call_operand.hbm [shape: f32[1,256], index: 4, kind: input, shape index: {}]
  %s5 = inlined_call_operand.hbm [shape: bf16[256,128], index: 5, kind: input, shape index: {}]
  %s6 = inlined_call_operand.vmem [shape: f32[1,128], index: 6, kind: input, shape index: {}]
  %s7 = inlined_call_operand.hbm [shape: f32[2,4], index: 7, kind: output, shape index: {0}]
  %s8 = inlined_call_operand.vmem [shape: f32[2,1], index: 8, kind: output, shape index: {1}]
  %9 = xla_tuple %s7, %s8
  %s10 = sld [smem:[#allocation0]]
  $region100: #{continuous_policy_forward.1} parent=0
    _
  %s12 = ssub.s32 1, %s10
  %s13 = scalar_select 0, %s12, %s10
  $region1: #{continuous_policy_forward.1} parent=0
    #allocation2 [shape = 'u8[8192]{0}', space=vmem, size = 0x2000, scoped, tag = 'input window, operand 0, single buffered']
    #allocation3 [shape = 's32[1]{0}', space=sflag, size = 0x4, scoped, tag = 'scoped memory for continuous_policy_forward.1']
    #allocation4 [shape = 's32[1]{0}', space=sflag, size = 0x4, scoped, tag = 'scoped memory for continuous_policy_forward.1']
    #allocation5 [shape = 'u8[8192]{0}', space=vmem, size = 0x2000, scoped, tag = 'input window, operand 1, single buffered']
    #allocation6 [shape = 's32[1]{0}', space=sflag, size = 0x4, scoped, tag = 'scoped memory for continuous_policy_forward.1']
    #allocation7 [shape = 'u8[1024]{0}', space=vmem, size = 0x400, scoped, tag = 'input window, operand 2, single buffered']
    #allocation8 [shape = 'u8[131072]{0}', space=vmem, size = 0x20000, scoped, tag = 'input window, operand 3, single buffered']
    #allocation9 [shape = 's32[1]{0}', space=sflag, size = 0x4, scoped, tag = 'scoped memory for continuous_policy_forward.1']
    #allocation10 [shape = 'u8[1024]{0}', space=vmem, size = 0x400, scoped, tag = 'input window, operand 4, single buffered']
    #allocation11 [shape = 'u8[65536]{0}', space=vmem, size = 0x10000, scoped, tag = 'input window, operand 5, single buffered']
    #allocation12 [shape = 's32[1]{0}', space=sflag, size = 0x4, scoped, tag = 'scoped memory for continuous_policy_forward.1']
    #allocation13 [shape = 'u8[8192]{0}', space=vmem, size = 0x2000, scoped, tag = 'output window, operand 0, single buffered']
    #allocation14 [shape = 'u8[8192]{0}', space=vmem, size = 0x2000, scoped, tag = 'output window, operand 1, single buffered']
    %14 = vsyncpa [#allocation3], 0
    %15 = vsyncpa [#allocation6], 0
    %16 = vsyncpa [#allocation9], 0
    %17 = vsyncpa [#allocation12], 0
    %18 = vsyncpa [#allocation4], 0
    // Predicated region
    $region2: #{continuous_policy_forward.1} parent=1 // pred_check
      _
    $region3: #{continuous_policy_forward.1} parent=1 // pred_check_branch
      %20 = sbr.rel (0) target = $region5
    $region4: #{continuous_policy_forward.1} parent=1 // pred_region
      %22 = vsyncadd [#allocation3], 224
      %s23 = sshll.u32 %s0, 4
      %s24 = int_to_ptr.hbm [resolvable:$true] %s23
      %s25 = sshll.u32 [#allocation2], 4
      %s26 = int_to_ptr.vmem [resolvable:$true] %s25
      %31 = dma.hbm_to_vmem [thread:$0]  %s24, 32, %s26, [#allocation3], 32, 32, 2
    $region5: #{continuous_policy_forward.1} parent=1 // pred_fallthru
      _
    // Predicated region
    $region6: #{continuous_policy_forward.1} parent=1 // pred_check
      _
    $region7: #{continuous_policy_forward.1} parent=1 // pred_check_branch
      %33 = sbr.rel (0) target = $region9
    $region8: #{continuous_policy_forward.1} parent=1 // pred_region
      %35 = vsyncadd [#allocation6], 0
      %s36 = sshll.u32 %s1, 4
      %s37 = int_to_ptr.hbm [resolvable:$true] %s36
      %s38 = sshll.u32 [#allocation5], 4
      %s39 = int_to_ptr.vmem [resolvable:$true] %s38
      %44 = dma.hbm_to_vmem [thread:$0]  %s37, 256, %s39, [#allocation6], 128, 128, 8
    $region9: #{continuous_policy_forward.1} parent=1 // pred_fallthru
      _
    // Predicated region
    $region10: #{continuous_policy_forward.1} parent=1 // pred_check
      _
    $region11: #{continuous_policy_forward.1} parent=1 // pred_check_branch
      %46 = sbr.rel (0) target = $region13
    $region12: #{continuous_policy_forward.1} parent=1 // pred_region
      %48 = vsyncadd [#allocation6], 0
      %s50 = sshll.u32 %s2, 4
      %s51 = int_to_ptr.hbm [resolvable:$true] %s50
      %s52 = sshll.u32 [#allocation7], 4
      %s53 = int_to_ptr.vmem [resolvable:$true] %s52
      %55 = dma.hbm_to_vmem [thread:$0]  %s51, 32, %s53, [#allocation6]
    $region13: #{continuous_policy_forward.1} parent=1 // pred_fallthru
      _
    // Predicated region
    $region14: #{continuous_policy_forward.1} parent=1 // pred_check
      _
    $region15: #{continuous_policy_forward.1} parent=1 // pred_check_branch
      %57 = sbr.rel (0) target = $region17
    $region16: #{continuous_policy_forward.1} parent=1 // pred_region
      %59 = vsyncadd [#allocation9], 0
      %s60 = sshll.u32 %s3, 4
      %s61 = int_to_ptr.hbm [resolvable:$true] %s60
      %s62 = sshll.u32 [#allocation8], 4
      %s63 = int_to_ptr.vmem [resolvable:$true] %s62
      %68 = dma.hbm_to_vmem [thread:$0]  %s61, 4096, %s63, [#allocation9], 128, 128, 8
    $region17: #{continuous_policy_forward.1} parent=1 // pred_fallthru
      _
    // Predicated region
    $region18: #{continuous_policy_forward.1} parent=1 // pred_check
      _
    $region19: #{continuous_policy_forward.1} parent=1 // pred_check_branch
      %70 = sbr.rel (0) target = $region21
    $region20: #{continuous_policy_forward.1} parent=1 // pred_region
      %72 = vsyncadd [#allocation9], 0
      %s74 = sshll.u32 %s4, 4
      %s75 = int_to_ptr.hbm [resolvable:$true] %s74
      %s76 = sshll.u32 [#allocation10], 4
      %s77 = int_to_ptr.vmem [resolvable:$true] %s76
      %79 = dma.hbm_to_vmem [thread:$0]  %s75, 32, %s77, [#allocation9]
    $region21: #{continuous_policy_forward.1} parent=1 // pred_fallthru
      _
    // Predicated region
    $region22: #{continuous_policy_forward.1} parent=1 // pred_check
      _
    $region23: #{continuous_policy_forward.1} parent=1 // pred_check_branch
      %81 = sbr.rel (0) target = $region25
    $region24: #{continuous_policy_forward.1} parent=1 // pred_region
      %83 = vsyncadd [#allocation12], 0
      %s84 = sshll.u32 %s5, 4
      %s85 = int_to_ptr.hbm [resolvable:$true] %s84
      %s86 = sshll.u32 [#allocation11], 4
      %s87 = int_to_ptr.vmem [resolvable:$true] %s86
      %92 = dma.hbm_to_vmem [thread:$0]  %s85, 2048, %s87, [#allocation12], 64, 64, 4
    $region25: #{continuous_policy_forward.1} parent=1 // pred_fallthru
      _
    // Predicated region
    $region26: #{continuous_policy_forward.1} parent=1 // pred_check
      _
    $region27: #{continuous_policy_forward.1} parent=1 // pred_check_branch
      %94 = sbr.rel (0) target = $region29
    $region28: #{continuous_policy_forward.1} parent=1 // pred_region
      _
    $region29: #{continuous_policy_forward.1} parent=1 // pred_fallthru
      _
    // Predicated region
    $region30: #{continuous_policy_forward.1} parent=1 // pred_check
      _
    $region31: #{continuous_policy_forward.1} parent=1 // pred_check_branch
      %96 = sbr.rel (0) target = $region33
    $region32: #{continuous_policy_forward.1} parent=1 // pred_region
      %98 = dma.done [#allocation3], 256
    $region33: #{continuous_policy_forward.1} parent=1 // pred_fallthru
      _
    // Predicated region
    $region34: #{continuous_policy_forward.1} parent=1 // pred_check
      _
    $region35: #{continuous_policy_forward.1} parent=1 // pred_check_branch
      %100 = sbr.rel (0) target = $region37
    $region36: #{continuous_policy_forward.1} parent=1 // pred_region
      %102 = dma.done [#allocation6], 256
    $region37: #{continuous_policy_forward.1} parent=1 // pred_fallthru
      _
    // Predicated region
    $region38: #{continuous_policy_forward.1} parent=1 // pred_check
      _
    $region39: #{continuous_policy_forward.1} parent=1 // pred_check_branch
      %104 = sbr.rel (0) target = $region41
    $region40: #{continuous_policy_forward.1} parent=1 // pred_region
      %106 = dma.done [#allocation6], 32
    $region41: #{continuous_policy_forward.1} parent=1 // pred_fallthru
      _
    // Predicated region
    $region42: #{continuous_policy_forward.1} parent=1 // pred_check
      _
    $region43: #{continuous_policy_forward.1} parent=1 // pred_check_branch
      %108 = sbr.rel (0) target = $region45
    $region44: #{continuous_policy_forward.1} parent=1 // pred_region
      %110 = dma.done [#allocation9], 4096
    $region45: #{continuous_policy_forward.1} parent=1 // pred_fallthru
      _
    // Predicated region
    $region46: #{continuous_policy_forward.1} parent=1 // pred_check
      _
    $region47: #{continuous_policy_forward.1} parent=1 // pred_check_branch
      %112 = sbr.rel (0) target = $region49
    $region48: #{continuous_policy_forward.1} parent=1 // pred_region
      %114 = dma.done [#allocation9], 32
    $region49: #{continuous_policy_forward.1} parent=1 // pred_fallthru
      _
    // Predicated region
    $region50: #{continuous_policy_forward.1} parent=1 // pred_check
      _
    $region51: #{continuous_policy_forward.1} parent=1 // pred_check_branch
      %116 = sbr.rel (0) target = $region53
    $region52: #{continuous_policy_forward.1} parent=1 // pred_region
      %118 = dma.done [#allocation12], 2048
    $region53: #{continuous_policy_forward.1} parent=1 // pred_fallthru
      _
    %v120 = vld [vmem:[#allocation2] sm:$0xff]
    %v121 = vld [vmem:[#allocation2 + $0x8] sm:$0xff]
    %v122 = vpack.c.bf16 %v121, %v120
    %v123 = vld [vmem:[#allocation5] sm:$0xff]
    %v124 = vld [vmem:[#allocation5 + $0x8] sm:$0xff]
    %v125 = vld [vmem:[#allocation7] sm:$0x3]
    %v127 = vperm.slane %v125, 0
    %v128 = vperm.slane %v125, 1
    %v133 = vunpack.c.l.b16 %v123
    %v134 = vunpack.c.h.b16 %v123
    %v135 = vunpack.c.l.b16 %v124
    %v136 = vunpack.c.h.b16 %v124
    %v137 = vpack.c.b16 %v135, %v133
    %v138 = vpack.c.b16 %v136, %v134
    %vm141 = vcmask 130048
    %v143 = vsel %vm141, %v122, 0
    %145 = vmatpush.bf16.msra.mxu0 0
    %146 = vmatpush.bf16.msra.mxu0 0
    %147 = vmatpush.bf16.msra.mxu0 0
    %148 = vmatpush.bf16.msra.mxu0 0
    %149 = vmatpush.bf16.msra.mxu0 0
    %150 = vmatpush.bf16.msra.mxu0 0
    %151 = vmatpush.bf16.msra.mxu0 0
    %152 = vmatpush.bf16.msra.mxu0 %v137
    %153 = vmatmul.bf16.gmra.mxu0 %v143
    %v154 = vpop.f32.mrf.mxu0
    %v155 = vadd.f32 %v127, %v154
    %v156 = vpop.f32.mrf.mxu0
    %v157 = vadd.f32 %v127, %v156
    %158 = vdwg.mxu0
    %159 = vmatpush.bf16.msra.mxu0 0
    %160 = vmatpush.bf16.msra.mxu0 0
    %161 = vmatpush.bf16.msra.mxu0 0
    %162 = vmatpush.bf16.msra.mxu0 0
    %163 = vmatpush.bf16.msra.mxu0 0
    %164 = vmatpush.bf16.msra.mxu0 0
    %165 = vmatpush.bf16.msra.mxu0 0
    %166 = vmatpush.bf16.msra.mxu0 %v138
    %167 = vmatmul.bf16.gmra.mxu0 %v143
    %v168 = vpop.f32.mrf.mxu0
    %v169 = vadd.f32 %v128, %v168
    %v170 = vpop.f32.mrf.mxu0
    %v171 = vadd.f32 %v128, %v170
    %172 = vdwg.mxu0
    %v173 = vmax.f32 %v155, 0.0
    %v174 = vmax.f32 %v169, 0.0
    %v175 = vmax.f32 %v157, 0.0
    %v176 = vmax.f32 %v171, 0.0
    %v177 = vpack.c.bf16 %v175, %v173
    %v178 = vpack.c.bf16 %v176, %v174
    %v179 = vld [vmem:[#allocation8] sm:$0xff]
    %v180 = vld [vmem:[#allocation8 + $0x8] sm:$0xff]
    %v181 = vld [vmem:[#allocation8 + $0x10] sm:$0xff]
    %v182 = vld [vmem:[#allocation8 + $0x18] sm:$0xff]
    %v183 = vld [vmem:[#allocation8 + $0x20] sm:$0xff]
    %v184 = vld [vmem:[#allocation8 + $0x28] sm:$0xff]
    %v185 = vld [vmem:[#allocation8 + $0x30] sm:$0xff]
    %v186 = vld [vmem:[#allocation8 + $0x38] sm:$0xff]
    %v187 = vld [vmem:[#allocation8 + $0x40] sm:$0xff]
    %v188 = vld [vmem:[#allocation8 + $0x48] sm:$0xff]
    %v189 = vld [vmem:[#allocation8 + $0x50] sm:$0xff]
    %v190 = vld [vmem:[#allocation8 + $0x58] sm:$0xff]
    %v191 = vld [vmem:[#allocation8 + $0x60] sm:$0xff]
    %v192 = vld [vmem:[#allocation8 + $0x68] sm:$0xff]
    %v193 = vld [vmem:[#allocation8 + $0x70] sm:$0xff]
    %v194 = vld [vmem:[#allocation8 + $0x78] sm:$0xff]
    %v195 = vld [vmem:[#allocation8 + $0x80] sm:$0xff]
    %v196 = vld [vmem:[#allocation8 + $0x88] sm:$0xff]
    %v197 = vld [vmem:[#allocation8 + $0x90] sm:$0xff]
    %v198 = vld [vmem:[#allocation8 + $0x98] sm:$0xff]
    %v199 = vld [vmem:[#allocation8 + $0xa0] sm:$0xff]
    %v200 = vld [vmem:[#allocation8 + $0xa8] sm:$0xff]
    %v201 = vld [vmem:[#allocation8 + $0xb0] sm:$0xff]
    %v202 = vld [vmem:[#allocation8 + $0xb8] sm:$0xff]
    %v203 = vld [vmem:[#allocation8 + $0xc0] sm:$0xff]
    %v204 = vld [vmem:[#allocation8 + $0xc8] sm:$0xff]
    %v205 = vld [vmem:[#allocation8 + $0xd0] sm:$0xff]
    %v206 = vld [vmem:[#allocation8 + $0xd8] sm:$0xff]
    %v207 = vld [vmem:[#allocation8 + $0xe0] sm:$0xff]
    %v208 = vld [vmem:[#allocation8 + $0xe8] sm:$0xff]
    %v209 = vld [vmem:[#allocation8 + $0xf0] sm:$0xff]
    %v210 = vld [vmem:[#allocation8 + $0xf8] sm:$0xff]
    %v211 = vld [vmem:[#allocation10] sm:$0x3]
    %v213 = vperm.slane %v211, 0
    %v214 = vperm.slane %v211, 1
    %v249 = vunpack.c.l.b16 %v179
    %v250 = vunpack.c.h.b16 %v179
    %v251 = vunpack.c.l.b16 %v180
    %v252 = vunpack.c.h.b16 %v180
    %v253 = vunpack.c.l.b16 %v181
    %v254 = vunpack.c.h.b16 %v181
    %v255 = vunpack.c.l.b16 %v182
    %v256 = vunpack.c.h.b16 %v182
    %v257 = vunpack.c.l.b16 %v183
    %v258 = vunpack.c.h.b16 %v183
    %v259 = vunpack.c.l.b16 %v184
    %v260 = vunpack.c.h.b16 %v184
    %v261 = vunpack.c.l.b16 %v185
    %v262 = vunpack.c.h.b16 %v185
    %v263 = vunpack.c.l.b16 %v186
    %v264 = vunpack.c.h.b16 %v186
    %v265 = vunpack.c.l.b16 %v187
    %v266 = vunpack.c.h.b16 %v187
    %v267 = vunpack.c.l.b16 %v188
    %v268 = vunpack.c.h.b16 %v188
    %v269 = vunpack.c.l.b16 %v189
    %v270 = vunpack.c.h.b16 %v189
    %v271 = vunpack.c.l.b16 %v190
    %v272 = vunpack.c.h.b16 %v190
    %v273 = vunpack.c.l.b16 %v191
    %v274 = vunpack.c.h.b16 %v191
    %v275 = vunpack.c.l.b16 %v192
    %v276 = vunpack.c.h.b16 %v192
    %v277 = vunpack.c.l.b16 %v193
    %v278 = vunpack.c.h.b16 %v193
    %v279 = vunpack.c.l.b16 %v194
    %v280 = vunpack.c.h.b16 %v194
    %v281 = vunpack.c.l.b16 %v195
    %v282 = vunpack.c.h.b16 %v195
    %v283 = vunpack.c.l.b16 %v196
    %v284 = vunpack.c.h.b16 %v196
    %v285 = vunpack.c.l.b16 %v197
    %v286 = vunpack.c.h.b16 %v197
    %v287 = vunpack.c.l.b16 %v198
    %v288 = vunpack.c.h.b16 %v198
    %v289 = vunpack.c.l.b16 %v199
    %v290 = vunpack.c.h.b16 %v199
    %v291 = vunpack.c.l.b16 %v200
    %v292 = vunpack.c.h.b16 %v200
    %v293 = vunpack.c.l.b16 %v201
    %v294 = vunpack.c.h.b16 %v201
    %v295 = vunpack.c.l.b16 %v202
    %v296 = vunpack.c.h.b16 %v202
    %v297 = vunpack.c.l.b16 %v203
    %v298 = vunpack.c.h.b16 %v203
    %v299 = vunpack.c.l.b16 %v204
    %v300 = vunpack.c.h.b16 %v204
    %v301 = vunpack.c.l.b16 %v205
    %v302 = vunpack.c.h.b16 %v205
    %v303 = vunpack.c.l.b16 %v206
    %v304 = vunpack.c.h.b16 %v206
    %v305 = vunpack.c.l.b16 %v207
    %v306 = vunpack.c.h.b16 %v207
    %v307 = vunpack.c.l.b16 %v208
    %v308 = vunpack.c.h.b16 %v208
    %v309 = vunpack.c.l.b16 %v209
    %v310 = vunpack.c.h.b16 %v209
    %v311 = vunpack.c.l.b16 %v210
    %v312 = vunpack.c.h.b16 %v210
    %v313 = vpack.c.b16 %v251, %v249
    %v314 = vpack.c.b16 %v252, %v250
    %v315 = vpack.c.b16 %v255, %v253
    %v316 = vpack.c.b16 %v256, %v254
    %v317 = vpack.c.b16 %v259, %v257
    %v318 = vpack.c.b16 %v260, %v258
    %v319 = vpack.c.b16 %v263, %v261
    %v320 = vpack.c.b16 %v264, %v262
    %v321 = vpack.c.b16 %v267, %v265
    %v322 = vpack.c.b16 %v268, %v266
    %v323 = vpack.c.b16 %v271, %v269
    %v324 = vpack.c.b16 %v272, %v270
    %v325 = vpack.c.b16 %v275, %v273
    %v326 = vpack.c.b16 %v276, %v274
    %v327 = vpack.c.b16 %v279, %v277
    %v328 = vpack.c.b16 %v280, %v278
    %v329 = vpack.c.b16 %v283, %v281
    %v330 = vpack.c.b16 %v284, %v282
    %v331 = vpack.c.b16 %v287, %v285
    %v332 = vpack.c.b16 %v288, %v286
    %v333 = vpack.c.b16 %v291, %v289
    %v334 = vpack.c.b16 %v292, %v290
    %v335 = vpack.c.b16 %v295, %v293
    %v336 = vpack.c.b16 %v296, %v294
    %v337 = vpack.c.b16 %v299, %v297
    %v338 = vpack.c.b16 %v300, %v298
    %v339 = vpack.c.b16 %v303, %v301
    %v340 = vpack.c.b16 %v304, %v302
    %v341 = vpack.c.b16 %v307, %v305
    %v342 = vpack.c.b16 %v308, %v306
    %v343 = vpack.c.b16 %v311, %v309
    %v344 = vpack.c.b16 %v312, %v310
    %377 = vmatpush.bf16.msra.mxu0 %v327
    %378 = vmatpush.bf16.msra.mxu0 %v325
    %379 = vmatpush.bf16.msra.mxu0 %v323
    %380 = vmatpush.bf16.msra.mxu0 %v321
    %381 = vmatpush.bf16.msra.mxu0 %v319
    %382 = vmatpush.bf16.msra.mxu0 %v317
    %383 = vmatpush.bf16.msra.mxu0 %v315
    %384 = vmatpush.bf16.msra.mxu0 %v313
    %385 = vmatmul.bf16.gmra.mxu0 %v177
    %v386 = vpop.f32.mrf.mxu0
    %v387 = vadd.f32 %v213, %v386
    %v388 = vpop.f32.mrf.mxu0
    %v389 = vadd.f32 %v213, %v388
    %390 = vdwg.mxu0
    %391 = vmatpush.bf16.msra.mxu0 %v343
    %392 = vmatpush.bf16.msra.mxu0 %v341
    %393 = vmatpush.bf16.msra.mxu0 %v339
    %394 = vmatpush.bf16.msra.mxu0 %v337
    %395 = vmatpush.bf16.msra.mxu0 %v335
    %396 = vmatpush.bf16.msra.mxu0 %v333
    %397 = vmatpush.bf16.msra.mxu0 %v331
    %398 = vmatpush.bf16.msra.mxu0 %v329
    %399 = vmatmul.bf16.gmra.mxu0 %v178
    %v400 = vpop.f32.mrf.mxu0
    %v401 = vadd.f32 %v387, %v400
    %v402 = vpop.f32.mrf.mxu0
    %v403 = vadd.f32 %v389, %v402
    %404 = vdwg.mxu0
    %405 = vmatpush.bf16.msra.mxu0 %v328
    %406 = vmatpush.bf16.msra.mxu0 %v326
    %407 = vmatpush.bf16.msra.mxu0 %v324
    %408 = vmatpush.bf16.msra.mxu0 %v322
    %409 = vmatpush.bf16.msra.mxu0 %v320
    %410 = vmatpush.bf16.msra.mxu0 %v318
    %411 = vmatpush.bf16.msra.mxu0 %v316
    %412 = vmatpush.bf16.msra.mxu0 %v314
    %413 = vmatmul.bf16.gmra.mxu0 %v177
    %v414 = vpop.f32.mrf.mxu0
    %v415 = vadd.f32 %v214, %v414
    %v416 = vpop.f32.mrf.mxu0
    %v417 = vadd.f32 %v214, %v416
    %418 = vdwg.mxu0
    %419 = vmatpush.bf16.msra.mxu0 %v344
    %420 = vmatpush.bf16.msra.mxu0 %v342
    %421 = vmatpush.bf16.msra.mxu0 %v340
    %422 = vmatpush.bf16.msra.mxu0 %v338
    %423 = vmatpush.bf16.msra.mxu0 %v336
    %424 = vmatpush.bf16.msra.mxu0 %v334
    %425 = vmatpush.bf16.msra.mxu0 %v332
    %426 = vmatpush.bf16.msra.mxu0 %v330
    %427 = vmatmul.bf16.gmra.mxu0 %v178
    %v428 = vpop.f32.mrf.mxu0
    %v429 = vadd.f32 %v415, %v428
    %v430 = vpop.f32.mrf.mxu0
    %v431 = vadd.f32 %v417, %v430
    %432 = vdwg.mxu0
    %v433 = vmax.f32 %v401, 0.0
    %v434 = vmax.f32 %v429, 0.0
    %v435 = vmax.f32 %v403, 0.0
    %v436 = vmax.f32 %v431, 0.0
    %v437 = vpack.c.bf16 %v435, %v433
    %v438 = vpack.c.bf16 %v436, %v434
    %v439 = vld [vmem:[#allocation11] sm:$0xf]
    %v440 = vld [vmem:[#allocation11 + $0x4] sm:$0xf]
    %v441 = vld [vmem:[#allocation11 + $0x8] sm:$0xf]
    %v442 = vld [vmem:[#allocation11 + $0xc] sm:$0xf]
    %v443 = vld [vmem:[#allocation11 + $0x10] sm:$0xf]
    %v444 = vld [vmem:[#allocation11 + $0x14] sm:$0xf]
    %v445 = vld [vmem:[#allocation11 + $0x18] sm:$0xf]
    %v446 = vld [vmem:[#allocation11 + $0x1c] sm:$0xf]
    %v447 = vld [vmem:[#allocation11 + $0x20] sm:$0xf]
    %v448 = vld [vmem:[#allocation11 + $0x24] sm:$0xf]
    %v449 = vld [vmem:[#allocation11 + $0x28] sm:$0xf]
    %v450 = vld [vmem:[#allocation11 + $0x2c] sm:$0xf]
    %v451 = vld [vmem:[#allocation11 + $0x30] sm:$0xf]
    %v452 = vld [vmem:[#allocation11 + $0x34] sm:$0xf]
    %v453 = vld [vmem:[#allocation11 + $0x38] sm:$0xf]
    %v454 = vld [vmem:[#allocation11 + $0x3c] sm:$0xf]
    %v455 = vld [vmem:[#allocation11 + $0x40] sm:$0xf]
    %v456 = vld [vmem:[#allocation11 + $0x44] sm:$0xf]
    %v457 = vld [vmem:[#allocation11 + $0x48] sm:$0xf]
    %v458 = vld [vmem:[#allocation11 + $0x4c] sm:$0xf]
    %v459 = vld [vmem:[#allocation11 + $0x50] sm:$0xf]
    %v460 = vld [vmem:[#allocation11 + $0x54] sm:$0xf]
    %v461 = vld [vmem:[#allocation11 + $0x58] sm:$0xf]
    %v462 = vld [vmem:[#allocation11 + $0x5c] sm:$0xf]
    %v463 = vld [vmem:[#allocation11 + $0x60] sm:$0xf]
    %v464 = vld [vmem:[#allocation11 + $0x64] sm:$0xf]
    %v465 = vld [vmem:[#allocation11 + $0x68] sm:$0xf]
    %v466 = vld [vmem:[#allocation11 + $0x6c] sm:$0xf]
    %v467 = vld [vmem:[#allocation11 + $0x70] sm:$0xf]
    %v468 = vld [vmem:[#allocation11 + $0x74] sm:$0xf]
    %v469 = vld [vmem:[#allocation11 + $0x78] sm:$0xf]
    %v470 = vld [vmem:[#allocation11 + $0x7c] sm:$0xf]
    %v471 = vld [vmem:[%s6] sm:$0x1]
    %v473 = vperm.slane %v471, 0
    %v507 = vunpack.c.l.b16 %v439
    %v508 = vunpack.c.l.b16 %v440
    %v509 = vunpack.c.l.b16 %v441
    %v510 = vunpack.c.l.b16 %v442
    %v511 = vunpack.c.l.b16 %v443
    %v512 = vunpack.c.l.b16 %v444
    %v513 = vunpack.c.l.b16 %v445
    %v514 = vunpack.c.l.b16 %v446
    %v515 = vunpack.c.l.b16 %v447
    %v516 = vunpack.c.l.b16 %v448
    %v517 = vunpack.c.l.b16 %v449
    %v518 = vunpack.c.l.b16 %v450
    %v519 = vunpack.c.l.b16 %v451
    %v520 = vunpack.c.l.b16 %v452
    %v521 = vunpack.c.l.b16 %v453
    %v522 = vunpack.c.l.b16 %v454
    %v523 = vunpack.c.l.b16 %v455
    %v524 = vunpack.c.l.b16 %v456
    %v525 = vunpack.c.l.b16 %v457
    %v526 = vunpack.c.l.b16 %v458
    %v527 = vunpack.c.l.b16 %v459
    %v528 = vunpack.c.l.b16 %v460
    %v529 = vunpack.c.l.b16 %v461
    %v530 = vunpack.c.l.b16 %v462
    %v531 = vunpack.c.l.b16 %v463
    %v532 = vunpack.c.l.b16 %v464
    %v533 = vunpack.c.l.b16 %v465
    %v534 = vunpack.c.l.b16 %v466
    %v535 = vunpack.c.l.b16 %v467
    %v536 = vunpack.c.l.b16 %v468
    %v537 = vunpack.c.l.b16 %v469
    %v538 = vunpack.c.l.b16 %v470
    %v539 = vpack.c.b16 %v508, %v507
    %v540 = vpack.c.b16 %v510, %v509
    %v541 = vpack.c.b16 %v512, %v511
    %v542 = vpack.c.b16 %v514, %v513
    %v543 = vpack.c.b16 %v516, %v515
    %v544 = vpack.c.b16 %v518, %v517
    %v545 = vpack.c.b16 %v520, %v519
    %v546 = vpack.c.b16 %v522, %v521
    %v547 = vpack.c.b16 %v524, %v523
    %v548 = vpack.c.b16 %v526, %v525
    %v549 = vpack.c.b16 %v528, %v527
    %v550 = vpack.c.b16 %v530, %v529
    %v551 = vpack.c.b16 %v532, %v531
    %v552 = vpack.c.b16 %v534, %v533
    %v553 = vpack.c.b16 %v536, %v535
    %v554 = vpack.c.b16 %v538, %v537
    %571 = vmatpush.bf16.msra.mxu0 %v546
    %572 = vmatpush.bf16.msra.mxu0 %v545
    %573 = vmatpush.bf16.msra.mxu0 %v544
    %574 = vmatpush.bf16.msra.mxu0 %v543
    %575 = vmatpush.bf16.msra.mxu0 %v542
    %576 = vmatpush.bf16.msra.mxu0 %v541
    %577 = vmatpush.bf16.msra.mxu0 %v540
    %578 = vmatpush.bf16.msra.mxu0 %v539
    %579 = vmatmul.bf16.gmra.mxu0 %v437
    %v580 = vpop.f32.mrf.mxu0
    %v581 = vadd.f32 %v473, %v580
    %v582 = vpop.f32.mrf.mxu0
    %v583 = vadd.f32 %v473, %v582
    %584 = vdwg.mxu0
    %585 = vmatpush.bf16.msra.mxu0 %v554
    %586 = vmatpush.bf16.msra.mxu0 %v553
    %587 = vmatpush.bf16.msra.mxu0 %v552
    %588 = vmatpush.bf16.msra.mxu0 %v551
    %589 = vmatpush.bf16.msra.mxu0 %v550
    %590 = vmatpush.bf16.msra.mxu0 %v549
    %591 = vmatpush.bf16.msra.mxu0 %v548
    %592 = vmatpush.bf16.msra.mxu0 %v547
    %593 = vmatmul.bf16.gmra.mxu0 %v438
    %v594 = vpop.f32.mrf.mxu0
    %v595 = vadd.f32 %v581, %v594
    %v596 = vpop.f32.mrf.mxu0
    %v597 = vadd.f32 %v583, %v596
    %598 = vdwg.mxu0
    %vm599 = vcmask 31744
    %600 = vst.msk [vmem:[#allocation13] sm:$0xff] %vm599, %v595
    %601 = vst.msk [vmem:[#allocation13 + $0x8] sm:$0xff] %vm599, %v597
    %604 = vrot.lane.b32.xlu0 %v595, 124
    %v605 = vpop.permute.xlu0 %604
    %606 = vrot.lane.b32.xlu0 %v597, 124
    %v607 = vpop.permute.xlu0 %606
    %vm610 = vcmask 7168
    %611 = vst.msk [vmem:[#allocation14] sm:$0xff] %vm610, %v605
    %612 = vst.msk [vmem:[#allocation14 + $0x8] sm:$0xff] %vm610, %v607
    // Predicated region
    $region54: #{continuous_policy_forward.1} parent=1 // pred_check
      _
    $region55: #{continuous_policy_forward.1} parent=1 // pred_check_branch
      %614 = sbr.rel (0) target = $region57
    $region56: #{continuous_policy_forward.1} parent=1 // pred_region
      %616 = vsyncadd [#allocation4], 224
      %s617 = sshll.u32 [#allocation13], 4
      %s618 = int_to_ptr.vmem [resolvable:$true] %s617
      %s619 = sshll.u32 %s7, 4
      %s620 = int_to_ptr.hbm [resolvable:$true] %s619
      %625 = dma.vmem_to_hbm [thread:$0]  %s618, 32, %s620, [#allocation4], 32, 32, 2
    $region57: #{continuous_policy_forward.1} parent=1 // pred_fallthru
      _
    // Predicated region
    $region58: #{continuous_policy_forward.1} parent=1 // pred_check
      _
    $region59: #{continuous_policy_forward.1} parent=1 // pred_check_branch
      %627 = sbr.rel (0) target = $region61
    $region60: #{continuous_policy_forward.1} parent=1 // pred_region
      // Predicated region
      $region62: #{continuous_policy_forward.1} parent=60 // pred_check
        _
      $region63: #{continuous_policy_forward.1} parent=60 // pred_check_branch
        %629 = sbr.rel (0) target = $region65
      $region64: #{continuous_policy_forward.1} parent=60 // pred_region
        // Predicated region
        $region66: #{continuous_policy_forward.1} parent=64 // pred_check
          _
        $region67: #{continuous_policy_forward.1} parent=64 // pred_check_branch
          %631 = sbr.rel target = $region69
        $region68: #{continuous_policy_forward.1} parent=64 // pred_region
          // Predicated region
          $region81: #{continuous_policy_forward.1} parent=68 // pred_check
            _
          $region82: #{continuous_policy_forward.1} parent=68 // pred_check_branch
            %647 = sbr.rel (0) target = $region84
          $region83: #{continuous_policy_forward.1} parent=68 // pred_region
            %s649 = ssub.s32 4, 1
            loop: start=0, step=1, limit=1
            $region85: #{continuous_policy_forward.1} parent=83 // loop_pre_header
              _
            $region86: #{continuous_policy_forward.1} parent=83 // loop_header
              %s651 = sphi 0, %s655
              %p652 = scmp.ge.s32.totalorder %s651, 1
              %s656 = sphi [#allocation14], [#allocation14]
              %s657 = sphi %s8, %s8
            $region87: #{continuous_policy_forward.1} parent=83 // loop_header_branch
              %654 = sbr.rel (%p652) target = $region91
            $region88: #{continuous_policy_forward.1} parent=83 // loop_body
              %v658 = vld [vmem:[%s656] sm:%s649]
              %659 = vst [vmem:[%s657] sm:%s649] %v658
            $region89: #{continuous_policy_forward.1} parent=83 // loop_footer
              %s655 = sadd.s32 1, %s651
            $region90: #{continuous_policy_forward.1} parent=83 // loop_footer_branch
              %650 = sbr.rel target = $region86
            $region91: #{continuous_policy_forward.1} parent=83 // loop_exit
              _
          $region84: #{continuous_policy_forward.1} parent=68 // pred_fallthru
            _
        $region69: #{continuous_policy_forward.1} parent=64 // pred_fallthru
          _
        // Predicated region
        $region70: #{continuous_policy_forward.1} parent=64 // pred_check
          _
        $region71: #{continuous_policy_forward.1} parent=64 // pred_check_branch
          %633 = sbr.rel (0) target = $region73
        $region72: #{continuous_policy_forward.1} parent=64 // pred_region
          %s635 = ssub.s32 4, 1
          loop: start=0, step=1, limit=1
          $region74: #{continuous_policy_forward.1} parent=72 // loop_pre_header
            _
          $region75: #{continuous_policy_forward.1} parent=72 // loop_header
            %s637 = sphi 0, %s641
            %p638 = scmp.ge.s32.totalorder %s637, 1
            %s642 = sphi [#allocation14], [#allocation14]
            %s643 = sphi %s8, %s8
          $region76: #{continuous_policy_forward.1} parent=72 // loop_header_branch
            %640 = sbr.rel (%p638) target = $region80
          $region77: #{continuous_policy_forward.1} parent=72 // loop_body
            %v644 = vld [vmem:[%s642] sm:%s635]
            %645 = vst [vmem:[%s643] sm:%s635] %v644
          $region78: #{continuous_policy_forward.1} parent=72 // loop_footer
            %s641 = sadd.s32 1, %s637
          $region79: #{continuous_policy_forward.1} parent=72 // loop_footer_branch
            %636 = sbr.rel target = $region75
          $region80: #{continuous_policy_forward.1} parent=72 // loop_exit
            _
        $region73: #{continuous_policy_forward.1} parent=64 // pred_fallthru
          _
      $region65: #{continuous_policy_forward.1} parent=60 // pred_fallthru
        _
      %660 = vnop
    $region61: #{continuous_policy_forward.1} parent=1 // pred_fallthru
      _
    // Predicated region
    $region92: #{continuous_policy_forward.1} parent=1 // pred_check
      _
    $region93: #{continuous_policy_forward.1} parent=1 // pred_check_branch
      %662 = sbr.rel (0) target = $region95
    $region94: #{continuous_policy_forward.1} parent=1 // pred_region
      %664 = dma.done [#allocation4], 256
    $region95: #{continuous_policy_forward.1} parent=1 // pred_fallthru
      _
    // Predicated region
    $region96: #{continuous_policy_forward.1} parent=1 // pred_check
      _
    $region97: #{continuous_policy_forward.1} parent=1 // pred_check_branch
      %666 = sbr.rel (0) target = $region99
    $region98: #{continuous_policy_forward.1} parent=1 // pred_region
      _
    $region99: #{continuous_policy_forward.1} parent=1 // pred_fallthru
      _
    %667 = vsyncpa [#allocation3], 1
    %668 = vsyncpa [#allocation6], 1
    %669 = vsyncpa [#allocation9], 1
    %670 = vsyncpa [#allocation12], 1
    %671 = vsyncpa [#allocation4], 1

</llo_original>
